<compile_context>
chip_gen: v7x
topology: tpu7x:2x2x1
jax: 0.10.0
libtpu: 0.0.40
codegen_flags: <defaults>
</compile_context>

<pallas_src>
import functools

import jax
import jax.numpy as jnp
from jax import lax
from jax.experimental import pallas as pl
from jax.experimental.pallas import tpu as pltpu


def _round_up(a, b):
    return ((a + b - 1) // b) * b


# ---------------------------------------------------------------------------
# Pallas kernel: fused, batched ParaMetricDiagonal metric -> diagonal vector
# ---------------------------------------------------------------------------
def _metric_mlp_kernel(parms_ref, w1_ref, b1_ref, w2_ref, b2_ref, w3_ref, b3_ref,
                       out_ref, *, n_dim, upper_bound, lower_bound,
                       scl_upper_bound, scl_lower_bound):
    p = parms_ref[...]                                  # (bb, parm_dim) f32
    w1 = w1_ref[...]
    w2 = w2_ref[...]
    w3 = w3_ref[...]
    wdt = w1.dtype                                      # f32 (or bf16 on v6e/v7x)

    # Fused DiagMap || ScaleMap MLP: 3 MXU matmuls instead of 6 dependent ones.
    # Elementwise math (bias add / ReLU / sigmoid / scaling) stays in f32 (v5e-safe).
    h = jnp.dot(p.astype(wdt), w1, preferred_element_type=jnp.float32) + b1_ref[...]
    h = jnp.maximum(h, 0.0)
    h = jnp.dot(h.astype(wdt), w2, preferred_element_type=jnp.float32) + b2_ref[...]
    h = jnp.maximum(h, 0.0)
    z = jnp.dot(h.astype(wdt), w3, preferred_element_type=jnp.float32) + b3_ref[...]
    # z columns [0:n_dim] = Pd (DiagMap), column n_dim = ScaleMap logit,
    # remaining lane-padding columns are junk and are sliced off outside.

    sig = jax.nn.sigmoid(z)                                              # (bb, OUTP), EUP
    scl = scl_lower_bound + sig[:, n_dim:n_dim + 1] * (scl_upper_bound - scl_lower_bound)
    p_diag = scl * (lower_bound + sig * (upper_bound - lower_bound))     # (bb, OUTP)
    out_ref[...] = p_diag.astype(out_ref.dtype)                          # lane-dense store


def para_metric_diag_forward(parms, fused, *, n_dim, upper_bound, lower_bound,
                             scl_upper_bound=0.2, scl_lower_bound=0.05, block_b=256):
    """Diagonal of ParaMetricDiagonal(parms) as a (B, n_dim) vector.
    (x is unused by this metric, matching the PyTorch module.)"""
    parms = jnp.asarray(parms, jnp.float32)
    if parms.ndim == 1:
        parms = parms[None, :]
    B, parm_dim = parms.shape

    bb = block_b if B >= block_b else _round_up(B, 8)
    B_pad = _round_up(B, bb)
    if B_pad != B:
        parms = jnp.pad(parms, ((0, B_pad - B), (0, 0)))

    w1, b1, w2, b2, w3, b3 = (fused[k] for k in ("w1", "b1", "w2", "b2", "w3", "b3"))
    H2P = w1.shape[1]
    OUTP = w3.shape[1]

    kernel = functools.partial(
        _metric_mlp_kernel, n_dim=n_dim,
        upper_bound=float(upper_bound), lower_bound=float(lower_bound),
        scl_upper_bound=float(scl_upper_bound), scl_lower_bound=float(scl_lower_bound))

    const = lambda i: (0, 0)   # weights/biases: same block every grid step -> no re-DMA

    out = pl.pallas_call(
        kernel,
        out_shape=jax.ShapeDtypeStruct((B_pad, OUTP), jnp.float32),
        grid=(B_pad // bb,),
        in_specs=[
            pl.BlockSpec((bb, parm_dim), lambda i: (i, 0)),
            pl.BlockSpec((parm_dim, H2P), const),
            pl.BlockSpec((1, H2P), const),
            pl.BlockSpec((H2P, H2P), const),
            pl.BlockSpec((1, H2P), const),
            pl.BlockSpec((H2P, OUTP), const),
            pl.BlockSpec((1, OUTP), const),
        ],
        out_specs=pl.BlockSpec((bb, OUTP), lambda i: (i, 0)),
        compiler_params=pltpu.CompilerParams(dimension_semantics=("parallel",)),
    )(parms, w1, b1, w2, b2, w3, b3)

    return out[:B, :n_dim]


# ---------------------------------------------------------------------------
# Host-side weight prep: init (PyTorch Linear layout), fuse + lane-pad
# ---------------------------------------------------------------------------
def init_metric_params(key, parm_dim, hidden_dim, n_dim):
    """Weights stored (in_features, out_features); biases (1, out)."""
    ks = jax.random.split(key, 12)

    def lin(kw, kb, fan_in, fan_out):
        bound = 1.0 / jnp.sqrt(fan_in)
        w = jax.random.uniform(kw, (fan_in, fan_out), jnp.float32, -bound, bound)
        b = jax.random.uniform(kb, (1, fan_out), jnp.float32, -bound, bound)
        return w, b

    w1d, b1d = lin(ks[0], ks[1], parm_dim, hidden_dim)
    w2d, b2d = lin(ks[2], ks[3], hidden_dim, hidden_dim)
    w3d, b3d = lin(ks[4], ks[5], hidden_dim, n_dim)
    w1s, b1s = lin(ks[6], ks[7], parm_dim, hidden_dim)
    w2s, b2s = lin(ks[8], ks[9], hidden_dim, hidden_dim)
    w3s, b3s = lin(ks[10], ks[11], hidden_dim, 1)
    return dict(w1d=w1d, b1d=b1d, w2d=w2d, b2d=b2d, w3d=w3d, b3d=b3d,
                w1s=w1s, b1s=b1s, w2s=w2s, b2s=b2s, w3s=w3s, b3s=b3s)


def fuse_and_pad_metric_params(raw, *, parm_dim, hidden_dim, n_dim,
                               weights_dtype=jnp.float32):
    """Fuse DiagMap+ScaleMap into one block-structured MLP; zero-pad output dims to 128.
    Padded hidden units have zero weights and zero bias -> ReLU(0)=0 -> contribute nothing."""
    H = hidden_dim
    H2 = 2 * H
    H2P = _round_up(H2, 128)
    OUTP = _round_up(n_dim + 1, 128)

    w1 = (jnp.zeros((parm_dim, H2P), jnp.float32)
          .at[:, :H].set(raw["w1d"]).at[:, H:H2].set(raw["w1s"]))
    b1 = (jnp.zeros((1, H2P), jnp.float32)
          .at[:, :H].set(raw["b1d"]).at[:, H:H2].set(raw["b1s"]))
    w2 = (jnp.zeros((H2P, H2P), jnp.float32)
          .at[:H, :H].set(raw["w2d"]).at[H:H2, H:H2].set(raw["w2s"]))
    b2 = (jnp.zeros((1, H2P), jnp.float32)
          .at[:, :H].set(raw["b2d"]).at[:, H:H2].set(raw["b2s"]))
    w3 = (jnp.zeros((H2P, OUTP), jnp.float32)
          .at[:H, :n_dim].set(raw["w3d"]).at[H:H2, n_dim:n_dim + 1].set(raw["w3s"]))
    b3 = (jnp.zeros((1, OUTP), jnp.float32)
          .at[:, :n_dim].set(raw["b3d"]).at[:, n_dim:n_dim + 1].set(raw["b3s"]))

    return dict(w1=w1.astype(weights_dtype), b1=b1,
                w2=w2.astype(weights_dtype), b2=b2,
                w3=w3.astype(weights_dtype), b3=b3)


def metric_diag_reference(parms, raw, *, upper_bound, lower_bound,
                          scl_upper_bound, scl_lower_bound):
    """Pure-JAX reference for the (unfused) ParaMetricDiagonal diagonal."""
    p = jnp.asarray(parms, jnp.float32)
    h = jnp.maximum(p @ raw["w1d"] + raw["b1d"], 0.0)
    h = jnp.maximum(h @ raw["w2d"] + raw["b2d"], 0.0)
    pd = h @ raw["w3d"] + raw["b3d"]
    g = jnp.maximum(p @ raw["w1s"] + raw["b1s"], 0.0)
    g = jnp.maximum(g @ raw["w2s"] + raw["b2s"], 0.0)
    s = g @ raw["w3s"] + raw["b3s"]
    scl = scl_lower_bound + jax.nn.sigmoid(s) * (scl_upper_bound - scl_lower_bound)
    return scl * (lower_bound + jax.nn.sigmoid(pd) * (upper_bound - lower_bound))


# ---------------------------------------------------------------------------
# ProxObjectivePlusEqualityConstraint.forward (JF_fixed=False, Hf_fixed=False)
# ---------------------------------------------------------------------------
def prox_forward(x, parms, *, f, F, metric_diag_fn, gamma=2.0):
    """Null-space prox solve; Pm = diag(metric_diag_fn(x, parms))."""
    x = jnp.asarray(x, jnp.float32)
    parms = jnp.asarray(parms, jnp.float32)
    n = x.shape[-1]

    # TODO(synk): autodiff of the user-supplied f / F has no Pallas equivalent; plain JAX.
    JFx = jax.vmap(jax.jacrev(F, argnums=0))(x, parms)       # (B, m, n)
    Hf = jax.vmap(jax.hessian(f, argnums=0))(x, parms)       # (B, n, n)
    fg = jax.vmap(jax.grad(f, argnums=0))(x, parms)          # (B, n)
    Fx = jax.vmap(F)(x, parms)                               # (B, m)
    m = Fx.shape[-1]

    # Metric diagonal (from the Pallas kernel, or a reference function).
    p_diag = metric_diag_fn(x, parms)                        # (B, n)

    # TODO(synk): batched complete QR / Cholesky / triangular solves have no clean
    # Pallas TPU equivalent; performed with jnp / lax.linalg.
    Qc, Rc = jnp.linalg.qr(jnp.swapaxes(JFx, -1, -2), mode="complete")  # (B,n,n), (B,n,m)
    Rr = Rc[:, :m, :]            # == Rc[:, :-null_dim, :]
    Qr = Qc[:, :, :m]
    Qn = Qc[:, :, m:]
    QnT = jnp.swapaxes(Qn, -1, -2)

    # Md = gamma/2 * Pm + Hf; diagonal metric applied elementwise (no dense diag matmul).
    idx = jnp.arange(n)
    Md = Hf.at[:, idx, idx].add((gamma / 2.0) * p_diag)
    Lcho = jnp.linalg.cholesky(QnT @ Md @ Qn)

    x_mat = x[..., None]
    b = -Fx[..., None] + JFx @ x_mat
    zeta_r = lax.linalg.triangular_solve(jnp.swapaxes(Rr, -1, -2), b,
                                         left_side=True, lower=True)
    zeta = Qr @ zeta_r
    zq = Md @ (x_mat - zeta) - (gamma / 2.0) * fg[..., None]
    zq = QnT @ zq
    zq = lax.linalg.triangular_solve(Lcho, zq, left_side=True, lower=True)
    zq = lax.linalg.triangular_solve(jnp.swapaxes(Lcho, -1, -2), zq,
                                     left_side=True, lower=False)
    x_new = Qn @ zq + zeta
    return jnp.squeeze(x_new, axis=-1)


if __name__ == "__main__":
    n_dim, parm_dim, m_eq, batch = 16, 8, 4, 8       # batch is a multiple of 8
    hidden_dim = 10 * parm_dim
    gamma = 2.0
    upper_bound, lower_bound = 1.0, 0.1
    scl_upper_bound, scl_lower_bound = 0.2, 0.05

    key = jax.random.PRNGKey(0)
    k_metric, k_x, k_parms, k_qf, k_wl, k_af, k_wc = jax.random.split(key, 7)

    raw = init_metric_params(k_metric, parm_dim, hidden_dim, n_dim)
    fused = fuse_and_pad_metric_params(raw, parm_dim=parm_dim, hidden_dim=hidden_dim,
                                       n_dim=n_dim, weights_dtype=jnp.float32)

    x = jax.random.normal(k_x, (batch, n_dim), jnp.float32)
    parms = jax.random.normal(k_parms, (batch, parm_dim), jnp.float32)

    # Quadratic objective f and affine constraints F (the case where this prox is exact).
    A = jax.random.normal(k_qf, (n_dim, n_dim), jnp.float32)
    Qf = A.T @ A / n_dim + jnp.eye(n_dim, dtype=jnp.float32)       # SPD Hessian of f
    Wl = 0.1 * jax.random.normal(k_wl, (n_dim, parm_dim), jnp.float32)
    A_F = jax.random.normal(k_af, (m_eq, n_dim), jnp.float32)
    Wc = 0.1 * jax.random.normal(k_wc, (m_eq, parm_dim), jnp.float32)

    def f(xs, ps):                 # unbatched, twice differentiable
        return 0.5 * xs @ (Qf @ xs) + xs @ (Wl @ ps)

    def F(xs, ps):                 # unbatched, R^n -> R^m, differentiable
        return A_F @ xs + Wc @ ps

    bounds = dict(upper_bound=upper_bound, lower_bound=lower_bound,
                  scl_upper_bound=scl_upper_bound, scl_lower_bound=scl_lower_bound)

    # ---- metric: Pallas kernel vs pure-JAX reference ----
    p_diag_kernel = para_metric_diag_forward(parms, fused, n_dim=n_dim, **bounds)
    p_diag_kernel = jax.block_until_ready(p_diag_kernel)
    p_diag_ref = metric_diag_reference(parms, raw, **bounds)
    assert p_diag_kernel.shape == (batch, n_dim)
    assert jnp.allclose(p_diag_kernel, p_diag_ref, atol=1e-5, rtol=1e-5), \
        "metric kernel mismatch vs pure-JAX reference"

    # ---- full ProxObjectivePlusEqualityConstraint forward ----
    metric_fn_kernel = lambda xx, pp: para_metric_diag_forward(pp, fused, n_dim=n_dim, **bounds)
    metric_fn_ref = lambda xx, pp: metric_diag_reference(pp, raw, **bounds)

    x_new = prox_forward(x, parms, f=f, F=F, metric_diag_fn=metric_fn_kernel, gamma=gamma)
    x_new = jax.block_until_ready(x_new)
    x_ref = prox_forward(x, parms, f=f, F=F, metric_diag_fn=metric_fn_ref, gamma=gamma)

    assert x_new.shape == (batch, n_dim)
    assert jnp.allclose(x_new, x_ref, atol=1e-3, rtol=1e-3), "prox forward mismatch"

    # Affine F => the linearized constraint is exact: F(x_new) ~= 0.
    residual = jax.vmap(F)(x_new, parms)
    assert float(jnp.max(jnp.abs(residual))) < 1e-3, "equality constraint not satisfied"

    print("KERNEL_OK")
</pallas_src>

<mosaic_0001>
module attributes {stable_mosaic.version = 11 : i64} {
  func.func @_metric_mlp_kernel(%arg0: i32, %arg1: memref<8x8xf32, #tpu.memory_space<vmem>>, %arg2: memref<8x256xf32, #tpu.memory_space<vmem>>, %arg3: memref<1x256xf32, #tpu.memory_space<vmem>>, %arg4: memref<256x256xf32, #tpu.memory_space<vmem>>, %arg5: memref<1x256xf32, #tpu.memory_space<vmem>>, %arg6: memref<256x128xf32, #tpu.memory_space<vmem>>, %arg7: memref<1x128xf32, #tpu.memory_space<vmem>>, %arg8: memref<8x128xf32, #tpu.memory_space<vmem>>) attributes {dimension_semantics = [#tpu.dimension_semantics<parallel>], iteration_bounds = array<i64: 1>, scalar_prefetch = 0 : i64, scratch_operands = 0 : i64, tpu.core_type = #tpu.core_type<tc>, window_params = [{transform_indices = @transform_0, window_bounds = array<i64: 8, 8>}, {pipeline_mode = #tpu.pipeline_mode<synchronous>, transform_indices = @transform_1, window_bounds = array<i64: 8, 256>}, {pipeline_mode = #tpu.pipeline_mode<synchronous>, transform_indices = @transform_2, window_bounds = array<i64: 1, 256>}, {pipeline_mode = #tpu.pipeline_mode<synchronous>, transform_indices = @transform_3, window_bounds = array<i64: 256, 256>}, {pipeline_mode = #tpu.pipeline_mode<synchronous>, transform_indices = @transform_4, window_bounds = array<i64: 1, 256>}, {pipeline_mode = #tpu.pipeline_mode<synchronous>, transform_indices = @transform_5, window_bounds = array<i64: 256, 128>}, {pipeline_mode = #tpu.pipeline_mode<synchronous>, transform_indices = @transform_6, window_bounds = array<i64: 1, 128>}, {transform_indices = @transform_7, window_bounds = array<i64: 8, 128>}]} {
    %c0 = arith.constant 0 : index
    %c0_0 = arith.constant 0 : index
    %0 = vector.load %arg1[%c0, %c0_0] : memref<8x8xf32, #tpu.memory_space<vmem>>, vector<8x8xf32>
    %c0_1 = arith.constant 0 : index
    %c0_2 = arith.constant 0 : index
    %1 = vector.load %arg2[%c0_1, %c0_2] : memref<8x256xf32, #tpu.memory_space<vmem>>, vector<8x256xf32>
    %c0_3 = arith.constant 0 : index
    %c0_4 = arith.constant 0 : index
    %2 = vector.load %arg4[%c0_3, %c0_4] : memref<256x256xf32, #tpu.memory_space<vmem>>, vector<256x256xf32>
    %c0_5 = arith.constant 0 : index
    %c0_6 = arith.constant 0 : index
    %3 = vector.load %arg6[%c0_5, %c0_6] : memref<256x128xf32, #tpu.memory_space<vmem>>, vector<256x128xf32>
    %cst = arith.constant dense<0.000000e+00> : vector<8x256xf32>
    %4 = tpu.matmul %0, %1, %cst {dimension_numbers = #tpu.dot_dimension_numbers<[1], [0], [0], [1], [0, 0, 1, 1], [], []>} : vector<8x8xf32>, vector<8x256xf32>, vector<8x256xf32> -> vector<8x256xf32>
    %c0_7 = arith.constant 0 : index
    %c0_8 = arith.constant 0 : index
    %5 = vector.load %arg3[%c0_7, %c0_8] : memref<1x256xf32, #tpu.memory_space<vmem>>, vector<1x256xf32>
    %6 = vector.broadcast %5 : vector<1x256xf32> to vector<8x256xf32>
    %7 = arith.addf %4, %6 : vector<8x256xf32>
    %cst_9 = arith.constant 0.000000e+00 : f32
    %8 = vector.broadcast %cst_9 : f32 to vector<8x256xf32>
    %9 = arith.maximumf %7, %8 : vector<8x256xf32>
    %cst_10 = arith.constant dense<0.000000e+00> : vector<8x256xf32>
    %10 = tpu.matmul %9, %2, %cst_10 {dimension_numbers = #tpu.dot_dimension_numbers<[1], [0], [0], [1], [0, 0, 1, 1], [], []>} : vector<8x256xf32>, vector<256x256xf32>, vector<8x256xf32> -> vector<8x256xf32>
    %c0_11 = arith.constant 0 : index
    %c0_12 = arith.constant 0 : index
    %11 = vector.load %arg5[%c0_11, %c0_12] : memref<1x256xf32, #tpu.memory_space<vmem>>, vector<1x256xf32>
    %12 = vector.broadcast %11 : vector<1x256xf32> to vector<8x256xf32>
    %13 = arith.addf %10, %12 : vector<8x256xf32>
    %cst_13 = arith.constant 0.000000e+00 : f32
    %14 = vector.broadcast %cst_13 : f32 to vector<8x256xf32>
    %15 = arith.maximumf %13, %14 : vector<8x256xf32>
    %cst_14 = arith.constant dense<0.000000e+00> : vector<8x128xf32>
    %16 = tpu.matmul %15, %3, %cst_14 {dimension_numbers = #tpu.dot_dimension_numbers<[1], [0], [0], [1], [0, 0, 1, 1], [], []>} : vector<8x256xf32>, vector<256x128xf32>, vector<8x128xf32> -> vector<8x128xf32>
    %c0_15 = arith.constant 0 : index
    %c0_16 = arith.constant 0 : index
    %17 = vector.load %arg7[%c0_15, %c0_16] : memref<1x128xf32, #tpu.memory_space<vmem>>, vector<1x128xf32>
    %18 = vector.broadcast %17 : vector<1x128xf32> to vector<8x128xf32>
    %19 = arith.addf %16, %18 : vector<8x128xf32>
    %20 = arith.negf %19 : vector<8x128xf32>
    %21 = math.exp %20 : vector<8x128xf32>
    %cst_17 = arith.constant 1.000000e+00 : f32
    %22 = vector.broadcast %cst_17 : f32 to vector<8x128xf32>
    %23 = arith.addf %22, %21 : vector<8x128xf32>
    %24 = arith.divf %22, %23 : vector<8x128xf32>
    %25 = vector.extract_strided_slice %24 {offsets = [0, 16], sizes = [8, 1], strides = [1, 1]} : vector<8x128xf32> to vector<8x1xf32>
    %cst_18 = arith.constant 1.500000e-01 : f32
    %26 = vector.broadcast %cst_18 : f32 to vector<8x1xf32>
    %27 = arith.mulf %25, %26 : vector<8x1xf32>
    %cst_19 = arith.constant 5.000000e-02 : f32
    %28 = vector.broadcast %cst_19 : f32 to vector<8x1xf32>
    %29 = arith.addf %28, %27 : vector<8x1xf32>
    %cst_20 = arith.constant 0.899999976 : f32
    %30 = vector.broadcast %cst_20 : f32 to vector<8x128xf32>
    %31 = arith.mulf %24, %30 : vector<8x128xf32>
    %cst_21 = arith.constant 1.000000e-01 : f32
    %32 = vector.broadcast %cst_21 : f32 to vector<8x128xf32>
    %33 = arith.addf %32, %31 : vector<8x128xf32>
    %34 = vector.broadcast %29 : vector<8x1xf32> to vector<8x128xf32>
    %35 = arith.mulf %34, %33 : vector<8x128xf32>
    %c0_22 = arith.constant 0 : index
    %c0_23 = arith.constant 0 : index
    %36 = vector.load %arg8[%c0_22, %c0_23] : memref<8x128xf32, #tpu.memory_space<vmem>>, vector<8x128xf32>
    tpu.vector_store %arg8[%c0_22, %c0_23], %35 {strides = array<i32>} : memref<8x128xf32, #tpu.memory_space<vmem>>, vector<8x128xf32>,
    return
  }
  func.func @transform_0(%arg0: i32) -> (i32, i32) {
    %c0_i32 = arith.constant 0 : i32
    %c0_i32_0 = arith.constant 0 : i32
    return %arg0, %c0_i32 : i32, i32
  }
  func.func @transform_1(%arg0: i32) -> (i32, i32) {
    %c0_i32 = arith.constant 0 : i32
    %c0_i32_0 = arith.constant 0 : i32
    %c0_i32_1 = arith.constant 0 : i32
    return %c0_i32, %c0_i32_0 : i32, i32
  }
  func.func @transform_2(%arg0: i32) -> (i32, i32) {
    %c0_i32 = arith.constant 0 : i32
    %c0_i32_0 = arith.constant 0 : i32
    %c0_i32_1 = arith.constant 0 : i32
    return %c0_i32, %c0_i32_0 : i32, i32
  }
  func.func @transform_3(%arg0: i32) -> (i32, i32) {
    %c0_i32 = arith.constant 0 : i32
    %c0_i32_0 = arith.constant 0 : i32
    %c0_i32_1 = arith.constant 0 : i32
    return %c0_i32, %c0_i32_0 : i32, i32
  }
  func.func @transform_4(%arg0: i32) -> (i32, i32) {
    %c0_i32 = arith.constant 0 : i32
    %c0_i32_0 = arith.constant 0 : i32
    %c0_i32_1 = arith.constant 0 : i32
    return %c0_i32, %c0_i32_0 : i32, i32
  }
  func.func @transform_5(%arg0: i32) -> (i32, i32) {
    %c0_i32 = arith.constant 0 : i32
    %c0_i32_0 = arith.constant 0 : i32
    %c0_i32_1 = arith.constant 0 : i32
    return %c0_i32, %c0_i32_0 : i32, i32
  }
  func.func @transform_6(%arg0: i32) -> (i32, i32) {
    %c0_i32 = arith.constant 0 : i32
    %c0_i32_0 = arith.constant 0 : i32
    %c0_i32_1 = arith.constant 0 : i32
    return %c0_i32, %c0_i32_0 : i32, i32
  }
  func.func @transform_7(%arg0: i32) -> (i32, i32) {
    %c0_i32 = arith.constant 0 : i32
    %c0_i32_0 = arith.constant 0 : i32
    return %arg0, %c0_i32 : i32, i32
  }
}

</mosaic_0001>

<llo_original>
// kernel: tpu_custom_call.1
$region0: #{tpu_custom_call.1}
  #allocation0 [shape = 'u32[]', space=smem, size = 0x4, offset = 0x4, fixed_abs, tag = 'smem constant byte address 0x4 - core index']
  #allocation1 [shape = 'u32[144,128]{1,0:T(1,128)}', space=vmem, size = 0x12000, scoped, tag = 'internal scratch']
  %s0 = inlined_call_operand.hbm [shape: f32[8,8], index: 0, kind: input, shape index: {}]
  %s1 = inlined_call_operand.hbm [shape: f32[8,256], index: 1, kind: input, shape index: {}]
  %s2 = inlined_call_operand.vmem [shape: f32[1,256], index: 2, kind: input, shape index: {}]
  %s3 = inlined_call_operand.hbm [shape: f32[256,256], index: 3, kind: input, shape index: {}]
  %s4 = inlined_call_operand.vmem [shape: f32[1,256], index: 4, kind: input, shape index: {}]
  %s5 = inlined_call_operand.hbm [shape: f32[256,128], index: 5, kind: input, shape index: {}]
  %s6 = inlined_call_operand.vmem [shape: f32[1,128], index: 6, kind: input, shape index: {}]
  %s7 = inlined_call_operand.hbm [shape: f32[8,128], index: 7, kind: output, shape index: {}]
  %s8 = sld [smem:[#allocation0]]
  $region54: #{tpu_custom_call.1} parent=0
    _
  %s10 = ssub.s32 1, %s8
  %s11 = scalar_select 0, %s10, %s8
  $region1: #{tpu_custom_call.1} parent=0
    #allocation2 [shape = 'u8[4096]{0}', space=vmem, size = 0x1000, scoped, tag = 'input window, operand 0, single buffered']
    #allocation3 [shape = 's32[1]{0}', space=sflag, size = 0x4, scoped, tag = 'scoped memory for tpu_custom_call.1']
    #allocation4 [shape = 's32[1]{0}', space=sflag, size = 0x4, scoped, tag = 'scoped memory for tpu_custom_call.1']
    #allocation5 [shape = 'u8[8192]{0}', space=vmem, size = 0x2000, scoped, tag = 'input window, operand 1, single buffered']
    #allocation6 [shape = 's32[1]{0}', space=sflag, size = 0x4, scoped, tag = 'scoped memory for tpu_custom_call.1']
    #allocation7 [shape = 'u8[262144]{0}', space=vmem, size = 0x40000, scoped, tag = 'input window, operand 3, single buffered']
    #allocation8 [shape = 'u8[131072]{0}', space=vmem, size = 0x20000, scoped, tag = 'input window, operand 5, single buffered']
    #allocation9 [shape = 's32[1]{0}', space=sflag, size = 0x4, scoped, tag = 'scoped memory for tpu_custom_call.1']
    #allocation10 [shape = 'u8[4096]{0}', space=vmem, size = 0x1000, scoped, tag = 'output window, operand 0, single buffered']
    %12 = vsyncpa [#allocation3], 0
    %13 = vsyncpa [#allocation6], 0
    %14 = vsyncpa [#allocation9], 0
    %15 = vsyncpa [#allocation4], 0
    // Predicated region
    $region2: #{tpu_custom_call.1} parent=1 // pred_check
      _
    $region3: #{tpu_custom_call.1} parent=1 // pred_check_branch
      %17 = sbr.rel (0) target = $region5
    $region4: #{tpu_custom_call.1} parent=1 // pred_region
      %s19 = ssub.s32 128, 128
      %20 = vsyncadd [#allocation3], %s19
      %s22 = sshll.u32 [#allocation2], 4
      %s23 = int_to_ptr.vmem [resolvable:$true] %s22
      %25 = dma.hbm_to_vmem [thread:$0]  %s0, 128, %s23, [#allocation3]
    $region5: #{tpu_custom_call.1} parent=1 // pred_fallthru
      _
    // Predicated region
    $region6: #{tpu_custom_call.1} parent=1 // pred_check
      _
    $region7: #{tpu_custom_call.1} parent=1 // pred_check_branch
      %27 = sbr.rel (0) target = $region9
    $region8: #{tpu_custom_call.1} parent=1 // pred_region
      %s29 = ssub.s32 256, 256
      %30 = vsyncadd [#allocation6], %s29
      %s32 = sshll.u32 [#allocation5], 4
      %s33 = int_to_ptr.vmem [resolvable:$true] %s32
      %35 = dma.hbm_to_vmem [thread:$0]  %s1, 256, %s33, [#allocation6]
    $region9: #{tpu_custom_call.1} parent=1 // pred_fallthru
      _
    // Predicated region
    $region10: #{tpu_custom_call.1} parent=1 // pred_check
      _
    $region11: #{tpu_custom_call.1} parent=1 // pred_check_branch
      %37 = sbr.rel (0) target = $region13
    $region12: #{tpu_custom_call.1} parent=1 // pred_region
      _
    $region13: #{tpu_custom_call.1} parent=1 // pred_fallthru
      _
    // Predicated region
    $region14: #{tpu_custom_call.1} parent=1 // pred_check
      _
    $region15: #{tpu_custom_call.1} parent=1 // pred_check_branch
      %39 = sbr.rel (0) target = $region17
    $region16: #{tpu_custom_call.1} parent=1 // pred_region
      %s41 = ssub.s32 8192, 8192
      %42 = vsyncadd [#allocation6], %s41
      %s43 = sshll.u32 [#allocation7], 4
      %s44 = int_to_ptr.vmem [resolvable:$true] %s43
      %49 = dma.hbm_to_vmem [thread:$0]  %s3, 8192, %s44, [#allocation6], 256, 256, 16
    $region17: #{tpu_custom_call.1} parent=1 // pred_fallthru
      _
    // Predicated region
    $region18: #{tpu_custom_call.1} parent=1 // pred_check
      _
    $region19: #{tpu_custom_call.1} parent=1 // pred_check_branch
      %51 = sbr.rel (0) target = $region21
    $region20: #{tpu_custom_call.1} parent=1 // pred_region
      _
    $region21: #{tpu_custom_call.1} parent=1 // pred_fallthru
      _
    // Predicated region
    $region22: #{tpu_custom_call.1} parent=1 // pred_check
      _
    $region23: #{tpu_custom_call.1} parent=1 // pred_check_branch
      %53 = sbr.rel (0) target = $region25
    $region24: #{tpu_custom_call.1} parent=1 // pred_region
      %s55 = ssub.s32 4096, 4096
      %56 = vsyncadd [#allocation9], %s55
      %s57 = sshll.u32 [#allocation8], 4
      %s58 = int_to_ptr.vmem [resolvable:$true] %s57
      %63 = dma.hbm_to_vmem [thread:$0]  %s5, 4096, %s58, [#allocation9], 128, 128, 8
    $region25: #{tpu_custom_call.1} parent=1 // pred_fallthru
      _
    // Predicated region
    $region26: #{tpu_custom_call.1} parent=1 // pred_check
      _
    $region27: #{tpu_custom_call.1} parent=1 // pred_check_branch
      %65 = sbr.rel (0) target = $region29
    $region28: #{tpu_custom_call.1} parent=1 // pred_region
      _
    $region29: #{tpu_custom_call.1} parent=1 // pred_fallthru
      _
    // Predicated region
    $region30: #{tpu_custom_call.1} parent=1 // pred_check
      _
    $region31: #{tpu_custom_call.1} parent=1 // pred_check_branch
      %67 = sbr.rel (0) target = $region33
    $region32: #{tpu_custom_call.1} parent=1 // pred_region
      %68 = dma.done [#allocation3], 128
    $region33: #{tpu_custom_call.1} parent=1 // pred_fallthru
      _
    // Predicated region
    $region34: #{tpu_custom_call.1} parent=1 // pred_check
      _
    $region35: #{tpu_custom_call.1} parent=1 // pred_check_branch
      %70 = sbr.rel (0) target = $region37
    $region36: #{tpu_custom_call.1} parent=1 // pred_region
      %71 = dma.done [#allocation6], 256
    $region37: #{tpu_custom_call.1} parent=1 // pred_fallthru
      _
    // Predicated region
    $region38: #{tpu_custom_call.1} parent=1 // pred_check
      _
    $region39: #{tpu_custom_call.1} parent=1 // pred_check_branch
      %73 = sbr.rel (0) target = $region41
    $region40: #{tpu_custom_call.1} parent=1 // pred_region
      %74 = dma.done [#allocation6], 8192
    $region41: #{tpu_custom_call.1} parent=1 // pred_fallthru
      _
    // Predicated region
    $region42: #{tpu_custom_call.1} parent=1 // pred_check
      _
    $region43: #{tpu_custom_call.1} parent=1 // pred_check_branch
      %76 = sbr.rel (0) target = $region45
    $region44: #{tpu_custom_call.1} parent=1 // pred_region
      %77 = dma.done [#allocation9], 4096
    $region45: #{tpu_custom_call.1} parent=1 // pred_fallthru
      _
    %v78 = vld [vmem:[#allocation2] sm:$0xff]
    %v79 = vld [vmem:[#allocation5] sm:$0xff]
    %v80 = vld [vmem:[#allocation5 + $0x8] sm:$0xff]
    %v81 = vld [vmem:[#allocation7] sm:$0xff]
    %v82 = vld [vmem:[#allocation7 + $0x8] sm:$0xff]
    %v83 = vld [vmem:[#allocation7 + $0x10] sm:$0xff]
    %v84 = vld [vmem:[#allocation7 + $0x18] sm:$0xff]
    %v85 = vld [vmem:[#allocation7 + $0x20] sm:$0xff]
    %v86 = vld [vmem:[#allocation7 + $0x28] sm:$0xff]
    %v87 = vld [vmem:[#allocation7 + $0x30] sm:$0xff]
    %v88 = vld [vmem:[#allocation7 + $0x38] sm:$0xff]
    %v89 = vld [vmem:[#allocation7 + $0x40] sm:$0xff]
    %v90 = vld [vmem:[#allocation7 + $0x48] sm:$0xff]
    %v91 = vld [vmem:[#allocation7 + $0x50] sm:$0xff]
    %v92 = vld [vmem:[#allocation7 + $0x58] sm:$0xff]
    %v93 = vld [vmem:[#allocation7 + $0x60] sm:$0xff]
    %v94 = vld [vmem:[#allocation7 + $0x68] sm:$0xff]
    %v95 = vld [vmem:[#allocation7 + $0x70] sm:$0xff]
    %v96 = vld [vmem:[#allocation7 + $0x78] sm:$0xff]
    %v97 = vld [vmem:[#allocation7 + $0x80] sm:$0xff]
    %v98 = vld [vmem:[#allocation7 + $0x88] sm:$0xff]
    %v99 = vld [vmem:[#allocation7 + $0x90] sm:$0xff]
    %v100 = vld [vmem:[#allocation7 + $0x98] sm:$0xff]
    %v101 = vld [vmem:[#allocation7 + $0xa0] sm:$0xff]
    %v102 = vld [vmem:[#allocation7 + $0xa8] sm:$0xff]
    %v103 = vld [vmem:[#allocation7 + $0xb0] sm:$0xff]
    %v104 = vld [vmem:[#allocation7 + $0xb8] sm:$0xff]
    %v105 = vld [vmem:[#allocation7 + $0xc0] sm:$0xff]
    %v106 = vld [vmem:[#allocation7 + $0xc8] sm:$0xff]
    %v107 = vld [vmem:[#allocation7 + $0xd0] sm:$0xff]
    %v108 = vld [vmem:[#allocation7 + $0xd8] sm:$0xff]
    %v109 = vld [vmem:[#allocation7 + $0xe0] sm:$0xff]
    %v110 = vld [vmem:[#allocation7 + $0xe8] sm:$0xff]
    %v111 = vld [vmem:[#allocation7 + $0xf0] sm:$0xff]
    %v112 = vld [vmem:[#allocation7 + $0xf8] sm:$0xff]
    %v113 = vld [vmem:[#allocation7 + $0x100] sm:$0xff]
    %v114 = vld [vmem:[#allocation7 + $0x108] sm:$0xff]
    %v115 = vld [vmem:[#allocation7 + $0x110] sm:$0xff]
    %v116 = vld [vmem:[#allocation7 + $0x118] sm:$0xff]
    %v117 = vld [vmem:[#allocation7 + $0x120] sm:$0xff]
    %v118 = vld [vmem:[#allocation7 + $0x128] sm:$0xff]
    %v119 = vld [vmem:[#allocation7 + $0x130] sm:$0xff]
    %v120 = vld [vmem:[#allocation7 + $0x138] sm:$0xff]
    %v121 = vld [vmem:[#allocation7 + $0x140] sm:$0xff]
    %v122 = vld [vmem:[#allocation7 + $0x148] sm:$0xff]
    %v123 = vld [vmem:[#allocation7 + $0x150] sm:$0xff]
    %v124 = vld [vmem:[#allocation7 + $0x158] sm:$0xff]
    %v125 = vld [vmem:[#allocation7 + $0x160] sm:$0xff]
    %v126 = vld [vmem:[#allocation7 + $0x168] sm:$0xff]
    %v127 = vld [vmem:[#allocation7 + $0x170] sm:$0xff]
    %v128 = vld [vmem:[#allocation7 + $0x178] sm:$0xff]
    %v129 = vld [vmem:[#allocation7 + $0x180] sm:$0xff]
    %v130 = vld [vmem:[#allocation7 + $0x188] sm:$0xff]
    %v131 = vld [vmem:[#allocation7 + $0x190] sm:$0xff]
    %v132 = vld [vmem:[#allocation7 + $0x198] sm:$0xff]
    %v133 = vld [vmem:[#allocation7 + $0x1a0] sm:$0xff]
    %v134 = vld [vmem:[#allocation7 + $0x1a8] sm:$0xff]
    %v135 = vld [vmem:[#allocation7 + $0x1b0] sm:$0xff]
    %v136 = vld [vmem:[#allocation7 + $0x1b8] sm:$0xff]
    %v137 = vld [vmem:[#allocation7 + $0x1c0] sm:$0xff]
    %v138 = vld [vmem:[#allocation7 + $0x1c8] sm:$0xff]
    %v139 = vld [vmem:[#allocation7 + $0x1d0] sm:$0xff]
    %v140 = vld [vmem:[#allocation7 + $0x1d8] sm:$0xff]
    %v141 = vld [vmem:[#allocation7 + $0x1e0] sm:$0xff]
    %v142 = vld [vmem:[#allocation7 + $0x1e8] sm:$0xff]
    %v143 = vld [vmem:[#allocation7 + $0x1f0] sm:$0xff]
    %v144 = vld [vmem:[#allocation7 + $0x1f8] sm:$0xff]
    %v145 = vld [vmem:[#allocation8] sm:$0xff]
    %v146 = vld [vmem:[#allocation8 + $0x8] sm:$0xff]
    %v147 = vld [vmem:[#allocation8 + $0x10] sm:$0xff]
    %v148 = vld [vmem:[#allocation8 + $0x18] sm:$0xff]
    %v149 = vld [vmem:[#allocation8 + $0x20] sm:$0xff]
    %v150 = vld [vmem:[#allocation8 + $0x28] sm:$0xff]
    %v151 = vld [vmem:[#allocation8 + $0x30] sm:$0xff]
    %v152 = vld [vmem:[#allocation8 + $0x38] sm:$0xff]
    %v153 = vld [vmem:[#allocation8 + $0x40] sm:$0xff]
    %v154 = vld [vmem:[#allocation8 + $0x48] sm:$0xff]
    %v155 = vld [vmem:[#allocation8 + $0x50] sm:$0xff]
    %v156 = vld [vmem:[#allocation8 + $0x58] sm:$0xff]
    %v157 = vld [vmem:[#allocation8 + $0x60] sm:$0xff]
    %v158 = vld [vmem:[#allocation8 + $0x68] sm:$0xff]
    %v159 = vld [vmem:[#allocation8 + $0x70] sm:$0xff]
    %v160 = vld [vmem:[#allocation8 + $0x78] sm:$0xff]
    %v161 = vld [vmem:[#allocation8 + $0x80] sm:$0xff]
    %v162 = vld [vmem:[#allocation8 + $0x88] sm:$0xff]
    %v163 = vld [vmem:[#allocation8 + $0x90] sm:$0xff]
    %v164 = vld [vmem:[#allocation8 + $0x98] sm:$0xff]
    %v165 = vld [vmem:[#allocation8 + $0xa0] sm:$0xff]
    %v166 = vld [vmem:[#allocation8 + $0xa8] sm:$0xff]
    %v167 = vld [vmem:[#allocation8 + $0xb0] sm:$0xff]
    %v168 = vld [vmem:[#allocation8 + $0xb8] sm:$0xff]
    %v169 = vld [vmem:[#allocation8 + $0xc0] sm:$0xff]
    %v170 = vld [vmem:[#allocation8 + $0xc8] sm:$0xff]
    %v171 = vld [vmem:[#allocation8 + $0xd0] sm:$0xff]
    %v172 = vld [vmem:[#allocation8 + $0xd8] sm:$0xff]
    %v173 = vld [vmem:[#allocation8 + $0xe0] sm:$0xff]
    %v174 = vld [vmem:[#allocation8 + $0xe8] sm:$0xff]
    %v175 = vld [vmem:[#allocation8 + $0xf0] sm:$0xff]
    %v176 = vld [vmem:[#allocation8 + $0xf8] sm:$0xff]
    %v177 = vld [vmem:[%s2] sm:$0x3]
    %v179 = vlaneseq
    %v180 = vshrl.u32 %v179, 7
    %v181 = vsub.s32 0, %v180
    %v182 = vrot.slane %v177, %v181
    %v183 = vlaneseq
    %v184 = vshrl.u32 %v183, 7
    %v185 = vsub.s32 1, %v184
    %v186 = vrot.slane %v177, %v185
    %vm189 = vcmask 64512
    %v191 = vsel %vm189, %v78, 0
    %193 = vmatprep.subr.mxu0 %v80
    %194 = vmatpush1.msra.mxu0 %v79
    %195 = vmatprep.subr.mxu0 0.0
    %196 = vmatpush1.msra.mxu0 0.0
    %197 = vmatprep.subr.mxu0 0.0
    %198 = vmatpush1.msra.mxu0 0.0
    %199 = vmatprep.subr.mxu0 0.0
    %200 = vmatpush1.msra.mxu0 0.0
    %201 = vmatprep.subr.mxu0 0.0
    %202 = vmatpush1.msra.mxu0 0.0
    %203 = vmatprep.subr.mxu0 0.0
    %204 = vmatpush1.msra.mxu0 0.0
    %205 = vmatprep.subr.mxu0 0.0
    %206 = vmatpush1.msra.mxu0 0.0
    %207 = vmatprep.subr.mxu0 0.0
    %208 = vmatpush1.msra.mxu0 0.0
    %209 = vmatprep.subr.mxu0 0.0
    %210 = vmatpush1.msra.mxu0 0.0
    %211 = vmatprep.subr.mxu0 0.0
    %212 = vmatpush1.msra.mxu0 0.0
    %213 = vmatprep.subr.mxu0 0.0
    %214 = vmatpush1.msra.mxu0 0.0
    %215 = vmatprep.subr.mxu0 0.0
    %216 = vmatpush1.msra.mxu0 0.0
    %217 = vmatprep.subr.mxu0 0.0
    %218 = vmatpush1.msra.mxu0 0.0
    %219 = vmatprep.subr.mxu0 0.0
    %220 = vmatpush1.msra.mxu0 0.0
    %221 = vmatprep.subr.mxu0 0.0
    %222 = vmatpush1.msra.mxu0 0.0
    %223 = vmatprep.subr.mxu0 0.0
    %224 = vmatpush1.msra.mxu0 0.0
    %225 = vmatprep.subr.mxu0 0.0
    %226 = vmatpush1.msra.mxu0 0.0
    %227 = vmatprep.subr.mxu0 0.0
    %228 = vmatpush1.msra.mxu0 0.0
    %229 = vmatprep.subr.mxu0 0.0
    %230 = vmatpush1.msra.mxu0 0.0
    %231 = vmatprep.subr.mxu0 0.0
    %232 = vmatpush1.msra.mxu0 0.0
    %233 = vmatprep.subr.mxu0 0.0
    %234 = vmatpush1.msra.mxu0 0.0
    %235 = vmatprep.subr.mxu0 0.0
    %236 = vmatpush1.msra.mxu0 0.0
    %237 = vmatprep.subr.mxu0 0.0
    %238 = vmatpush1.msra.mxu0 0.0
    %239 = vmatprep.subr.mxu0 0.0
    %240 = vmatpush1.msra.mxu0 0.0
    %241 = vmatprep.subr.mxu0 0.0
    %242 = vmatpush1.msra.mxu0 0.0
    %243 = vmatprep.subr.mxu0 0.0
    %244 = vmatpush1.msra.mxu0 0.0
    %245 = vmatprep.subr.mxu0 0.0
    %246 = vmatpush1.msra.mxu0 0.0
    %247 = vmatprep.subr.mxu0 0.0
    %248 = vmatpush1.msra.mxu0 0.0
    %249 = vmatprep.subr.mxu0 0.0
    %250 = vmatpush1.msra.mxu0 0.0
    %251 = vmatprep.subr.mxu0 0.0
    %252 = vmatpush1.msra.mxu0 0.0
    %253 = vmatprep.subr.mxu0 0.0
    %254 = vmatpush1.msra.mxu0 0.0
    %255 = vmatprep.subr.mxu0 0.0
    %256 = vmatpush1.msra.mxu0 0.0
    %257 = vmatprep.mubr.f32.mxu0 0.0
    %258 = vmatmul.mubr.f32.gmra.mrb[0].mxu0 %v191
    %v259 = vpop.f32.mrb[0].mxu0
    %v260 = vadd.f32 %v182, %v259
    %v261 = vpop.f32.mrb[0].mxu0
    %v262 = vadd.f32 %v186, %v261
    %263 = vdwg.mxu0
    %v264 = vmax.f32 %v260, 0.0
    %v265 = vmax.f32 %v262, 0.0
    %v266 = vld [vmem:[%s4] sm:$0x3]
    %v268 = vlaneseq
    %v269 = vshrl.u32 %v268, 7
    %v270 = vsub.s32 0, %v269
    %v271 = vrot.slane %v266, %v270
    %v272 = vlaneseq
    %v273 = vshrl.u32 %v272, 7
    %v274 = vsub.s32 1, %v273
    %v275 = vrot.slane %v266, %v274
    %278 = vmatprep.subr.mxu0 %v82
    %279 = vmatpush1.msra.mxu0 %v81
    %280 = vmatprep.subr.mxu0 %v84
    %281 = vmatpush1.msra.mxu0 %v83
    %282 = vmatprep.subr.mxu0 %v86
    %283 = vmatpush1.msra.mxu0 %v85
    %284 = vmatprep.subr.mxu0 %v88
    %285 = vmatpush1.msra.mxu0 %v87
    %286 = vmatprep.subr.mxu0 %v90
    %287 = vmatpush1.msra.mxu0 %v89
    %288 = vmatprep.subr.mxu0 %v92
    %289 = vmatpush1.msra.mxu0 %v91
    %290 = vmatprep.subr.mxu0 %v94
    %291 = vmatpush1.msra.mxu0 %v93
    %292 = vmatprep.subr.mxu0 %v96
    %293 = vmatpush1.msra.mxu0 %v95
    %294 = vmatprep.subr.mxu0 %v98
    %295 = vmatpush1.msra.mxu0 %v97
    %296 = vmatprep.subr.mxu0 %v100
    %297 = vmatpush1.msra.mxu0 %v99
    %298 = vmatprep.subr.mxu0 %v102
    %299 = vmatpush1.msra.mxu0 %v101
    %300 = vmatprep.subr.mxu0 %v104
    %301 = vmatpush1.msra.mxu0 %v103
    %302 = vmatprep.subr.mxu0 %v106
    %303 = vmatpush1.msra.mxu0 %v105
    %304 = vmatprep.subr.mxu0 %v108
    %305 = vmatpush1.msra.mxu0 %v107
    %306 = vmatprep.subr.mxu0 %v110
    %307 = vmatpush1.msra.mxu0 %v109
    %308 = vmatprep.subr.mxu0 %v112
    %309 = vmatpush1.msra.mxu0 %v111
    %310 = vmatprep.subr.mxu0 %v114
    %311 = vmatpush1.msra.mxu0 %v113
    %312 = vmatprep.subr.mxu0 %v116
    %313 = vmatpush1.msra.mxu0 %v115
    %314 = vmatprep.subr.mxu0 %v118
    %315 = vmatpush1.msra.mxu0 %v117
    %316 = vmatprep.subr.mxu0 %v120
    %317 = vmatpush1.msra.mxu0 %v119
    %318 = vmatprep.subr.mxu0 %v122
    %319 = vmatpush1.msra.mxu0 %v121
    %320 = vmatprep.subr.mxu0 %v124
    %321 = vmatpush1.msra.mxu0 %v123
    %322 = vmatprep.subr.mxu0 %v126
    %323 = vmatpush1.msra.mxu0 %v125
    %324 = vmatprep.subr.mxu0 %v128
    %325 = vmatpush1.msra.mxu0 %v127
    %326 = vmatprep.subr.mxu0 %v130
    %327 = vmatpush1.msra.mxu0 %v129
    %328 = vmatprep.subr.mxu0 %v132
    %329 = vmatpush1.msra.mxu0 %v131
    %330 = vmatprep.subr.mxu0 %v134
    %331 = vmatpush1.msra.mxu0 %v133
    %332 = vmatprep.subr.mxu0 %v136
    %333 = vmatpush1.msra.mxu0 %v135
    %334 = vmatprep.subr.mxu0 %v138
    %335 = vmatpush1.msra.mxu0 %v137
    %336 = vmatprep.subr.mxu0 %v140
    %337 = vmatpush1.msra.mxu0 %v139
    %338 = vmatprep.subr.mxu0 %v142
    %339 = vmatpush1.msra.mxu0 %v141
    %340 = vmatprep.subr.mxu0 %v144
    %341 = vmatpush1.msra.mxu0 %v143
    %342 = vmatprep.mubr.f32.mxu0 %v265
    %343 = vmatmul.mubr.f32.gmra.mrb[0].mxu0 %v264
    %v344 = vpop.f32.mrb[0].mxu0
    %v345 = vadd.f32 %v271, %v344
    %v346 = vpop.f32.mrb[0].mxu0
    %v347 = vadd.f32 %v275, %v346
    %348 = vdwg.mxu0
    %v349 = vmax.f32 %v345, 0.0
    %v350 = vmax.f32 %v347, 0.0
    %v351 = vld [vmem:[%s6] sm:$0x1]
    %v353 = vlaneseq
    %v354 = vshrl.u32 %v353, 7
    %v355 = vsub.s32 0, %v354
    %v356 = vrot.slane %v351, %v355
    %358 = vmatprep.subr.mxu0 0.0
    %359 = vmatpush1.msra.mxu0 %v145
    %360 = vmatprep.subr.mxu0 0.0
    %361 = vmatpush1.msra.mxu0 %v146
    %362 = vmatprep.subr.mxu0 0.0
    %363 = vmatpush1.msra.mxu0 %v147
    %364 = vmatprep.subr.mxu0 0.0
    %365 = vmatpush1.msra.mxu0 %v148
    %366 = vmatprep.subr.mxu0 0.0
    %367 = vmatpush1.msra.mxu0 %v149
    %368 = vmatprep.subr.mxu0 0.0
    %369 = vmatpush1.msra.mxu0 %v150
    %370 = vmatprep.subr.mxu0 0.0
    %371 = vmatpush1.msra.mxu0 %v151
    %372 = vmatprep.subr.mxu0 0.0
    %373 = vmatpush1.msra.mxu0 %v152
    %374 = vmatprep.subr.mxu0 0.0
    %375 = vmatpush1.msra.mxu0 %v153
    %376 = vmatprep.subr.mxu0 0.0
    %377 = vmatpush1.msra.mxu0 %v154
    %378 = vmatprep.subr.mxu0 0.0
    %379 = vmatpush1.msra.mxu0 %v155
    %380 = vmatprep.subr.mxu0 0.0
    %381 = vmatpush1.msra.mxu0 %v156
    %382 = vmatprep.subr.mxu0 0.0
    %383 = vmatpush1.msra.mxu0 %v157
    %384 = vmatprep.subr.mxu0 0.0
    %385 = vmatpush1.msra.mxu0 %v158
    %386 = vmatprep.subr.mxu0 0.0
    %387 = vmatpush1.msra.mxu0 %v159
    %388 = vmatprep.subr.mxu0 0.0
    %389 = vmatpush1.msra.mxu0 %v160
    %390 = vmatprep.subr.mxu0 0.0
    %391 = vmatpush1.msra.mxu0 %v161
    %392 = vmatprep.subr.mxu0 0.0
    %393 = vmatpush1.msra.mxu0 %v162
    %394 = vmatprep.subr.mxu0 0.0
    %395 = vmatpush1.msra.mxu0 %v163
    %396 = vmatprep.subr.mxu0 0.0
    %397 = vmatpush1.msra.mxu0 %v164
    %398 = vmatprep.subr.mxu0 0.0
    %399 = vmatpush1.msra.mxu0 %v165
    %400 = vmatprep.subr.mxu0 0.0
    %401 = vmatpush1.msra.mxu0 %v166
    %402 = vmatprep.subr.mxu0 0.0
    %403 = vmatpush1.msra.mxu0 %v167
    %404 = vmatprep.subr.mxu0 0.0
    %405 = vmatpush1.msra.mxu0 %v168
    %406 = vmatprep.subr.mxu0 0.0
    %407 = vmatpush1.msra.mxu0 %v169
    %408 = vmatprep.subr.mxu0 0.0
    %409 = vmatpush1.msra.mxu0 %v170
    %410 = vmatprep.subr.mxu0 0.0
    %411 = vmatpush1.msra.mxu0 %v171
    %412 = vmatprep.subr.mxu0 0.0
    %413 = vmatpush1.msra.mxu0 %v172
    %414 = vmatprep.subr.mxu0 0.0
    %415 = vmatpush1.msra.mxu0 %v173
    %416 = vmatprep.subr.mxu0 0.0
    %417 = vmatpush1.msra.mxu0 %v174
    %418 = vmatprep.subr.mxu0 0.0
    %419 = vmatpush1.msra.mxu0 %v175
    %420 = vmatprep.subr.mxu0 0.0
    %421 = vmatpush1.msra.mxu0 %v176
    %422 = vmatprep.mubr.f32.mxu0 %v350
    %423 = vmatmul.mubr.f32.gmra.mrb[0].mxu0 %v349
    %v424 = vpop.f32.mrb[0].mxu0
    %v425 = vadd.f32 %v356, %v424
    %v426 = vpop.f32.mrb[0].mxu0
    %427 = vdwg.mxu0
    %v428 = vxor.u32 %v425, 2147483648
    %v429 = vmul.f32 %v428, 1.442695
    %v430 = vpow.pop %v429
    %v431 = vadd.f32 %v430, 1.0
    %v432 = vrcp.pop %v431
    %v433 = vmul.f32 1.0, %v432
    %v434 = vmul.f32 %v433, 0.15
    %v435 = vadd.f32 %v434, 0.05
    %v436 = vmul.f32 %v433, 0.9
    %v437 = vadd.f32 %v436, 0.1
    %439 = vset.pattern.permute.xlu0 16
    %440 = vperm.xlu0 %439, %v435
    %v441 = vpop.permute.xlu0 %440
    %v443 = vmul.f32 %v441, %v437
    %444 = vst [vmem:[#allocation10] sm:$0xff] %v443
    // Predicated region
    $region46: #{tpu_custom_call.1} parent=1 // pred_check
      _
    $region47: #{tpu_custom_call.1} parent=1 // pred_check_branch
      %446 = sbr.rel (0) target = $region49
    $region48: #{tpu_custom_call.1} parent=1 // pred_region
      %s448 = ssub.s32 128, 128
      %449 = vsyncadd [#allocation4], %s448
      %s451 = sshll.u32 [#allocation10], 4
      %s452 = int_to_ptr.vmem [resolvable:$true] %s451
      %454 = dma.vmem_to_hbm [thread:$0]  %s452, 128, %s7, [#allocation4]
    $region49: #{tpu_custom_call.1} parent=1 // pred_fallthru
      _
    // Predicated region
    $region50: #{tpu_custom_call.1} parent=1 // pred_check
      _
    $region51: #{tpu_custom_call.1} parent=1 // pred_check_branch
      %456 = sbr.rel (0) target = $region53
    $region52: #{tpu_custom_call.1} parent=1 // pred_region
      %457 = dma.done [#allocation4], 128
    $region53: #{tpu_custom_call.1} parent=1 // pred_fallthru
      _
    %458 = vsyncpa [#allocation3], 1
    %459 = vsyncpa [#allocation6], 1
    %460 = vsyncpa [#allocation9], 1
    %461 = vsyncpa [#allocation4], 1

</llo_original>
